<compile_context>
chip_gen: v5e
topology: v5e:2x2
jax: 0.10.0
libtpu: 0.0.40
codegen_flags: <defaults>
</compile_context>

<pallas_src>
import jax
import jax.numpy as jnp
from jax.experimental import pallas as pl
from jax.experimental.pallas import tpu as pltpu

# ---- hyperparameters (scaled down but structurally identical to the module) ----
B = 4            # demo batch
D = 128          # img_feat_size == txt_feat_size
K = 8            # fusion K (pool window)
O = 128          # fusion O
KO = K * O       # proj_i / proj_t output width
H2 = 32          # linear2 out
NCLS = 2         # linear3 out
PPROJ = 192      # proj out
OUT_W = 256      # lane-dense fused output width: [proj (192) | logits (2) | zero pad (62)]


def tiny_kernel(x_ref, y_ref, wi_ref, bi_ref, wt_ref, bt_ref, wh_ref, bh_ref, out_ref):
    tb = out_ref.shape[0]

    # fusion.proj_i / proj_t (columns pre-permuted to K-major); bf16 operands, f32 acc.
    img = jnp.dot(x_ref[...], wi_ref[...], preferred_element_type=jnp.float32) + bi_ref[...]
    txt = jnp.dot(y_ref[...], wt_ref[...], preferred_element_type=jnp.float32) + bt_ref[...]

    # elementwise fusion (dropout == identity in eval); keep f32 on the VPU
    # TODO(synk): training-mode dropout would need pltpu.prng_seed / prng_random_bits.
    exp_out = img * txt                                           # (TB, KO) f32

    # AvgPool1d(K, stride=K) * K == chunk-sum. With K-major columns this is K-1
    # vreg-boundary-aligned (TB, O) adds -- no pool matrix, no extra MXU launch.
    z = exp_out[:, :O]
    for k in range(1, K):
        z = z + exp_out[:, k * O:(k + 1) * O]                     # (TB, O) f32

    # F.normalize (L2 over feature dim, eps=1e-12): rsqrt on the EUP + multiply.
    ssq = jnp.sum(z * z, axis=-1, keepdims=True)
    z_n = z * jax.lax.rsqrt(jnp.maximum(ssq, 1e-24))

    # Fused head (linear2∘linear3 folded + proj) in ONE MXU launch:
    #   LHS = [relu(z_n); z_n]   (2*TB, O)  bf16
    #   RHS = [wp | w2@w3 | 0]   (O, 256)   bf16
    lhs = jnp.concatenate([jnp.maximum(z_n, 0.0), z_n], axis=0).astype(jnp.bfloat16)
    hp = jnp.dot(lhs, wh_ref[...], preferred_element_type=jnp.float32) + bh_ref[...]

    # Assemble [proj | logits | 0] with a lane select and store once (unmasked):
    #   cols <  PPROJ -> rows TB..2TB (z_n branch)  = z_n @ wp + bp
    #   cols >= PPROJ -> rows 0..TB   (relu branch) = relu @ [w23 | 0] + [b23 | 0]
    col = jax.lax.broadcasted_iota(jnp.int32, (tb, OUT_W), 1)
    out_ref[...] = jnp.where(col < PPROJ, hp[tb:, :], hp[:tb, :])


def _round_up(a, b):
    return -(-a // b) * b


def _choose_tb(n):
    # Fill the MXU rows (128 on v5e, 256 on v6e/v7x) and amortize per-step overhead.
    # Small batches: one grid step, rounded to a 16-row (bf16 sublane-pack) multiple.
    # Large batches: 256-row tiles (>= 2 grid steps for n >= 512, so both v7x TCs work).
    if n <= 256:
        return max(16, _round_up(n, 16))
    return 256


def tiny_model(x, y, params):
    wi, bi, wt, bt, w2, b2, w3, b3, wp, bp = params

    # ---- wrapper-side weight prep (one-time layout plumbing, not per-step compute) ----
    # K-major column permutation: new col (k*O + o) <- old col (o*K + k), so the
    # in-kernel pooling sum is contiguous (TB, O) slab adds.
    perm = (jnp.arange(O)[None, :] * K + jnp.arange(K)[:, None]).reshape(-1)
    wi_p = wi[:, perm].astype(jnp.bfloat16)
    wt_p = wt[:, perm].astype(jnp.bfloat16)
    bi_p = bi[:, perm]
    bt_p = bt[:, perm]

    # Fold linear3 into linear2 (exact: no nonlinearity in between).
    w23 = jnp.dot(w2, w3)                       # (O, NCLS) f32
    b23 = jnp.dot(b2, w3) + b3                  # (1, NCLS) f32

    # Fused head RHS / bias, zero-padded lane-dense to OUT_W: [wp | w23 | 0].
    wh = jnp.zeros((O, OUT_W), jnp.float32)
    wh = wh.at[:, :PPROJ].set(wp)
    wh = wh.at[:, PPROJ:PPROJ + NCLS].set(w23)
    wh = wh.astype(jnp.bfloat16)
    bh = jnp.zeros((1, OUT_W), jnp.float32)
    bh = bh.at[:, :PPROJ].set(bp)
    bh = bh.at[:, PPROJ:PPROJ + NCLS].set(b23)

    # Activations to bf16 in the wrapper (halves per-step HBM input traffic).
    x = x.astype(jnp.bfloat16)
    y = y.astype(jnp.bfloat16)

    n = x.shape[0]
    tb = _choose_tb(n)
    n_pad = pl.cdiv(n, tb) * tb
    if n_pad != n:
        x = jnp.pad(x, ((0, n_pad - n), (0, 0)))
        y = jnp.pad(y, ((0, n_pad - n), (0, 0)))

    act = lambda: pl.BlockSpec((tb, D), lambda i: (i, 0))
    full = lambda shp: pl.BlockSpec(shp, lambda i: (0, 0))   # weights: VMEM-resident

    out = pl.pallas_call(
        tiny_kernel,
        out_shape=jax.ShapeDtypeStruct((n_pad, OUT_W), jnp.float32),
        grid_spec=pltpu.PrefetchScalarGridSpec(
            num_scalar_prefetch=0,
            grid=(n_pad // tb,),
            in_specs=[
                act(), act(),                         # x, y (per-step batch blocks)
                full((D, KO)), full((1, KO)),         # wi (K-major, bf16), bi
                full((D, KO)), full((1, KO)),         # wt (K-major, bf16), bt
                full((O, OUT_W)), full((1, OUT_W)),   # [wp | w2@w3 | 0], [bp | b23 | 0]
            ],
            out_specs=pl.BlockSpec((tb, OUT_W), lambda i: (i, 0)),
        ),
        compiler_params=pltpu.CompilerParams(
            dimension_semantics=("parallel",)),
    )(x, y, wi_p, bi_p, wt_p, bt_p, wh, bh)

    logits = out[:n, PPROJ:PPROJ + NCLS]
    proj = out[:n, :PPROJ]
    return logits, proj


def make_params(key):
    ks = jax.random.split(key, 10)
    scale = 0.02

    def lin(kw, kb, fin, fout):
        w = scale * jax.random.normal(kw, (fin, fout), jnp.float32)
        b = scale * jax.random.normal(kb, (1, fout), jnp.float32)
        return w, b

    wi, bi = lin(ks[0], ks[1], D, KO)
    wt, bt = lin(ks[2], ks[3], D, KO)
    w2, b2 = lin(ks[4], ks[5], O, H2)
    w3, b3 = lin(ks[6], ks[7], H2, NCLS)
    wp, bp = lin(ks[8], ks[9], O, PPROJ)
    return (wi, bi, wt, bt, w2, b2, w3, b3, wp, bp)


def reference(x, y, params):
    # Mirrors the module's forward (unpermuted weights, unfused linear2/linear3);
    # matmul operands cast to bf16 with f32 accumulation, matching the MXU behavior.
    wi, bi, wt, bt, w2, b2, w3, b3, wp, bp = params
    bf = jnp.bfloat16
    n = x.shape[0]
    img = jnp.dot(x.astype(bf), wi.astype(bf), preferred_element_type=jnp.float32) + bi
    txt = jnp.dot(y.astype(bf), wt.astype(bf), preferred_element_type=jnp.float32) + bt
    exp_out = img * txt
    z = jnp.sum(exp_out.reshape(n, O, K), axis=-1)               # AvgPool1d(K) * K
    z = z / jnp.maximum(jnp.linalg.norm(z, axis=-1, keepdims=True), 1e-12)
    m = jnp.maximum(z, 0.0)
    h = jnp.dot(m.astype(bf), w2.astype(bf), preferred_element_type=jnp.float32) + b2
    out1 = jnp.dot(h, w3, preferred_element_type=jnp.float32) + b3
    out2 = jnp.dot(z.astype(bf), wp.astype(bf), preferred_element_type=jnp.float32) + bp
    return out1, out2


if __name__ == "__main__":
    key = jax.random.PRNGKey(0)
    kx, ky, kp = jax.random.split(key, 3)
    x = jax.random.normal(kx, (B, D), jnp.float32)
    y = jax.random.normal(ky, (B, D), jnp.float32)
    params = make_params(kp)

    out_m, out_proj = tiny_model(x, y, params)
    jax.block_until_ready((out_m, out_proj))

    ref_m, ref_proj = reference(x, y, params)
    assert out_m.shape == (B, NCLS) and out_proj.shape == (B, PPROJ)
    # Logits tolerance slightly relaxed: the w2@w3 fold (and K-major pooling adds)
    # change the floating-point summation order vs the unfused reference.
    assert jnp.allclose(out_m, ref_m, atol=2e-4, rtol=1e-3)
    assert jnp.allclose(out_proj, ref_proj, atol=1e-4, rtol=1e-3)

    print("KERNEL_OK")
</pallas_src>

<mosaic_0001>
module attributes {stable_mosaic.version = 11 : i64} {
  func.func @tiny_kernel(%arg0: i32, %arg1: memref<16x128xbf16, #tpu.memory_space<vmem>>, %arg2: memref<16x128xbf16, #tpu.memory_space<vmem>>, %arg3: memref<128x1024xbf16, #tpu.memory_space<vmem>>, %arg4: memref<1x1024xf32, #tpu.memory_space<vmem>>, %arg5: memref<128x1024xbf16, #tpu.memory_space<vmem>>, %arg6: memref<1x1024xf32, #tpu.memory_space<vmem>>, %arg7: memref<128x256xbf16, #tpu.memory_space<vmem>>, %arg8: memref<1x256xf32, #tpu.memory_space<vmem>>, %arg9: memref<16x256xf32, #tpu.memory_space<vmem>>) attributes {dimension_semantics = [#tpu.dimension_semantics<parallel>], iteration_bounds = array<i64: 1>, scalar_prefetch = 0 : i64, scratch_operands = 0 : i64, tpu.core_type = #tpu.core_type<tc>, window_params = [{transform_indices = @transform_0, window_bounds = array<i64: 16, 128>}, {transform_indices = @transform_1, window_bounds = array<i64: 16, 128>}, {pipeline_mode = #tpu.pipeline_mode<synchronous>, transform_indices = @transform_2, window_bounds = array<i64: 128, 1024>}, {pipeline_mode = #tpu.pipeline_mode<synchronous>, transform_indices = @transform_3, window_bounds = array<i64: 1, 1024>}, {pipeline_mode = #tpu.pipeline_mode<synchronous>, transform_indices = @transform_4, window_bounds = array<i64: 128, 1024>}, {pipeline_mode = #tpu.pipeline_mode<synchronous>, transform_indices = @transform_5, window_bounds = array<i64: 1, 1024>}, {pipeline_mode = #tpu.pipeline_mode<synchronous>, transform_indices = @transform_6, window_bounds = array<i64: 128, 256>}, {pipeline_mode = #tpu.pipeline_mode<synchronous>, transform_indices = @transform_7, window_bounds = array<i64: 1, 256>}, {transform_indices = @transform_8, window_bounds = array<i64: 16, 256>}]} {
    %c0 = arith.constant 0 : index
    %c0_0 = arith.constant 0 : index
    %0 = vector.load %arg1[%c0, %c0_0] : memref<16x128xbf16, #tpu.memory_space<vmem>>, vector<16x128xbf16>
    %c0_1 = arith.constant 0 : index
    %c0_2 = arith.constant 0 : index
    %1 = vector.load %arg3[%c0_1, %c0_2] : memref<128x1024xbf16, #tpu.memory_space<vmem>>, vector<128x1024xbf16>
    %cst = arith.constant dense<0.000000e+00> : vector<16x1024xf32>
    %2 = tpu.matmul %0, %1, %cst {dimension_numbers = #tpu.dot_dimension_numbers<[1], [0], [0], [1], [0, 0, 1, 1], [], []>} : vector<16x128xbf16>, vector<128x1024xbf16>, vector<16x1024xf32> -> vector<16x1024xf32>
    %c0_3 = arith.constant 0 : index
    %c0_4 = arith.constant 0 : index
    %3 = vector.load %arg4[%c0_3, %c0_4] : memref<1x1024xf32, #tpu.memory_space<vmem>>, vector<1x1024xf32>
    %4 = vector.broadcast %3 : vector<1x1024xf32> to vector<16x1024xf32>
    %5 = arith.addf %2, %4 : vector<16x1024xf32>
    %c0_5 = arith.constant 0 : index
    %c0_6 = arith.constant 0 : index
    %6 = vector.load %arg2[%c0_5, %c0_6] : memref<16x128xbf16, #tpu.memory_space<vmem>>, vector<16x128xbf16>
    %c0_7 = arith.constant 0 : index
    %c0_8 = arith.constant 0 : index
    %7 = vector.load %arg5[%c0_7, %c0_8] : memref<128x1024xbf16, #tpu.memory_space<vmem>>, vector<128x1024xbf16>
    %cst_9 = arith.constant dense<0.000000e+00> : vector<16x1024xf32>
    %8 = tpu.matmul %6, %7, %cst_9 {dimension_numbers = #tpu.dot_dimension_numbers<[1], [0], [0], [1], [0, 0, 1, 1], [], []>} : vector<16x128xbf16>, vector<128x1024xbf16>, vector<16x1024xf32> -> vector<16x1024xf32>
    %c0_10 = arith.constant 0 : index
    %c0_11 = arith.constant 0 : index
    %9 = vector.load %arg6[%c0_10, %c0_11] : memref<1x1024xf32, #tpu.memory_space<vmem>>, vector<1x1024xf32>
    %10 = vector.broadcast %9 : vector<1x1024xf32> to vector<16x1024xf32>
    %11 = arith.addf %8, %10 : vector<16x1024xf32>
    %12 = arith.mulf %5, %11 : vector<16x1024xf32>
    %13 = vector.extract_strided_slice %12 {offsets = [0, 0], sizes = [16, 128], strides = [1, 1]} : vector<16x1024xf32> to vector<16x128xf32>
    %14 = vector.extract_strided_slice %12 {offsets = [0, 128], sizes = [16, 128], strides = [1, 1]} : vector<16x1024xf32> to vector<16x128xf32>
    %15 = arith.addf %13, %14 : vector<16x128xf32>
    %16 = vector.extract_strided_slice %12 {offsets = [0, 256], sizes = [16, 128], strides = [1, 1]} : vector<16x1024xf32> to vector<16x128xf32>
    %17 = arith.addf %15, %16 : vector<16x128xf32>
    %18 = vector.extract_strided_slice %12 {offsets = [0, 384], sizes = [16, 128], strides = [1, 1]} : vector<16x1024xf32> to vector<16x128xf32>
    %19 = arith.addf %17, %18 : vector<16x128xf32>
    %20 = vector.extract_strided_slice %12 {offsets = [0, 512], sizes = [16, 128], strides = [1, 1]} : vector<16x1024xf32> to vector<16x128xf32>
    %21 = arith.addf %19, %20 : vector<16x128xf32>
    %22 = vector.extract_strided_slice %12 {offsets = [0, 640], sizes = [16, 128], strides = [1, 1]} : vector<16x1024xf32> to vector<16x128xf32>
    %23 = arith.addf %21, %22 : vector<16x128xf32>
    %24 = vector.extract_strided_slice %12 {offsets = [0, 768], sizes = [16, 128], strides = [1, 1]} : vector<16x1024xf32> to vector<16x128xf32>
    %25 = arith.addf %23, %24 : vector<16x128xf32>
    %26 = vector.extract_strided_slice %12 {offsets = [0, 896], sizes = [16, 128], strides = [1, 1]} : vector<16x1024xf32> to vector<16x128xf32>
    %27 = arith.addf %25, %26 : vector<16x128xf32>
    %28 = arith.mulf %27, %27 : vector<16x128xf32>
    %cst_12 = arith.constant dense<0.000000e+00> : vector<16xf32>
    %29 = vector.multi_reduction <add>, %28, %cst_12 [1] : vector<16x128xf32> to vector<16xf32>
    %30 = vector.shape_cast %29 : vector<16xf32> to vector<16x1xf32>
    %cst_13 = arith.constant 1.000000e-24 : f32
    %31 = vector.broadcast %cst_13 : f32 to vector<16x1xf32>
    %32 = arith.maximumf %30, %31 : vector<16x1xf32>
    %33 = math.rsqrt %32 : vector<16x1xf32>
    %34 = vector.broadcast %33 : vector<16x1xf32> to vector<16x128xf32>
    %35 = arith.mulf %27, %34 : vector<16x128xf32>
    %cst_14 = arith.constant 0.000000e+00 : f32
    %36 = vector.broadcast %cst_14 : f32 to vector<16x128xf32>
    %37 = arith.maximumf %35, %36 : vector<16x128xf32>
    %38 = tpu.concatenate %37, %35 in 0 : vector<16x128xf32>, vector<16x128xf32> -> vector<32x128xf32>
    %39 = arith.truncf %38 : vector<32x128xf32> to vector<32x128xbf16>
    %c0_15 = arith.constant 0 : index
    %c0_16 = arith.constant 0 : index
    %40 = vector.load %arg7[%c0_15, %c0_16] : memref<128x256xbf16, #tpu.memory_space<vmem>>, vector<128x256xbf16>
    %cst_17 = arith.constant dense<0.000000e+00> : vector<32x256xf32>
    %41 = tpu.matmul %39, %40, %cst_17 {dimension_numbers = #tpu.dot_dimension_numbers<[1], [0], [0], [1], [0, 0, 1, 1], [], []>} : vector<32x128xbf16>, vector<128x256xbf16>, vector<32x256xf32> -> vector<32x256xf32>
    %c0_18 = arith.constant 0 : index
    %c0_19 = arith.constant 0 : index
    %42 = vector.load %arg8[%c0_18, %c0_19] : memref<1x256xf32, #tpu.memory_space<vmem>>, vector<1x256xf32>
    %43 = vector.broadcast %42 : vector<1x256xf32> to vector<32x256xf32>
    %44 = arith.addf %41, %43 : vector<32x256xf32>
    %45 = tpu.iota {dimensions = array<i32: 1>} : vector<16x256xi32>
    %c192_i32 = arith.constant 192 : i32
    %46 = vector.broadcast %c192_i32 : i32 to vector<16x256xi32>
    %47 = arith.cmpi slt, %45, %46 : vector<16x256xi32>
    %48 = vector.extract_strided_slice %44 {offsets = [16, 0], sizes = [16, 256], strides = [1, 1]} : vector<32x256xf32> to vector<16x256xf32>
    %49 = vector.extract_strided_slice %44 {offsets = [0, 0], sizes = [16, 256], strides = [1, 1]} : vector<32x256xf32> to vector<16x256xf32>
    %50 = arith.select %47, %48, %49 : vector<16x256xi1>, vector<16x256xf32>
    %c0_20 = arith.constant 0 : index
    %c0_21 = arith.constant 0 : index
    %51 = vector.load %arg9[%c0_20, %c0_21] : memref<16x256xf32, #tpu.memory_space<vmem>>, vector<16x256xf32>
    tpu.vector_store %arg9[%c0_20, %c0_21], %50 {strides = array<i32>} : memref<16x256xf32, #tpu.memory_space<vmem>>, vector<16x256xf32>,
    return
  }
  func.func @transform_0(%arg0: i32) -> (i32, i32) {
    %c0_i32 = arith.constant 0 : i32
    %c0_i32_0 = arith.constant 0 : i32
    return %arg0, %c0_i32 : i32, i32
  }
  func.func @transform_1(%arg0: i32) -> (i32, i32) {
    %c0_i32 = arith.constant 0 : i32
    %c0_i32_0 = arith.constant 0 : i32
    return %arg0, %c0_i32 : i32, i32
  }
  func.func @transform_2(%arg0: i32) -> (i32, i32) {
    %c0_i32 = arith.constant 0 : i32
    %c0_i32_0 = arith.constant 0 : i32
    %c0_i32_1 = arith.constant 0 : i32
    return %c0_i32, %c0_i32_0 : i32, i32
  }
  func.func @transform_3(%arg0: i32) -> (i32, i32) {
    %c0_i32 = arith.constant 0 : i32
    %c0_i32_0 = arith.constant 0 : i32
    %c0_i32_1 = arith.constant 0 : i32
    return %c0_i32, %c0_i32_0 : i32, i32
  }
  func.func @transform_4(%arg0: i32) -> (i32, i32) {
    %c0_i32 = arith.constant 0 : i32
    %c0_i32_0 = arith.constant 0 : i32
    %c0_i32_1 = arith.constant 0 : i32
    return %c0_i32, %c0_i32_0 : i32, i32
  }
  func.func @transform_5(%arg0: i32) -> (i32, i32) {
    %c0_i32 = arith.constant 0 : i32
    %c0_i32_0 = arith.constant 0 : i32
    %c0_i32_1 = arith.constant 0 : i32
    return %c0_i32, %c0_i32_0 : i32, i32
  }
  func.func @transform_6(%arg0: i32) -> (i32, i32) {
    %c0_i32 = arith.constant 0 : i32
    %c0_i32_0 = arith.constant 0 : i32
    %c0_i32_1 = arith.constant 0 : i32
    return %c0_i32, %c0_i32_0 : i32, i32
  }
  func.func @transform_7(%arg0: i32) -> (i32, i32) {
    %c0_i32 = arith.constant 0 : i32
    %c0_i32_0 = arith.constant 0 : i32
    %c0_i32_1 = arith.constant 0 : i32
    return %c0_i32, %c0_i32_0 : i32, i32
  }
  func.func @transform_8(%arg0: i32) -> (i32, i32) {
    %c0_i32 = arith.constant 0 : i32
    %c0_i32_0 = arith.constant 0 : i32
    return %arg0, %c0_i32 : i32, i32
  }
}

</mosaic_0001>

<llo_original>
// kernel: tpu_custom_call.1
$region0: #{tpu_custom_call.1}
  #allocation0 [shape = 'u32[]', space=smem, size = 0x4, offset = 0x4, fixed_abs, tag = 'smem constant byte address 0x4 - core index']
  #allocation1 [shape = 'u32[72,128]{1,0:T(1,128)}', space=vmem, size = 0x9000, scoped, tag = 'internal scratch']
  %s0 = inlined_call_operand.hbm [shape: bf16[16,128], index: 0, kind: input, shape index: {}]
  %s1 = inlined_call_operand.hbm [shape: bf16[16,128], index: 1, kind: input, shape index: {}]
  %s2 = inlined_call_operand.hbm [shape: bf16[128,1024], index: 2, kind: input, shape index: {}]
  %s3 = inlined_call_operand.hbm [shape: f32[1,1024], index: 3, kind: input, shape index: {}]
  %s4 = inlined_call_operand.hbm [shape: bf16[128,1024], index: 4, kind: input, shape index: {}]
  %s5 = inlined_call_operand.hbm [shape: f32[1,1024], index: 5, kind: input, shape index: {}]
  %s6 = inlined_call_operand.hbm [shape: bf16[128,256], index: 6, kind: input, shape index: {}]
  %s7 = inlined_call_operand.vmem [shape: f32[1,256], index: 7, kind: input, shape index: {}]
  %s8 = inlined_call_operand.hbm [shape: f32[16,256], index: 8, kind: output, shape index: {}]
  %s9 = sld [smem:[#allocation0]]
  $region70: #{tpu_custom_call.1} parent=0
    _
  %s11 = ssub.s32 1, %s9
  %s12 = scalar_select 0, %s11, %s9
  $region1: #{tpu_custom_call.1} parent=0
    #allocation2 [shape = 'u8[4096]{0}', space=vmem, size = 0x1000, scoped, tag = 'input window, operand 0, single buffered']
    #allocation3 [shape = 's32[1]{0}', space=sflag, size = 0x4, scoped, tag = 'scoped memory for tpu_custom_call.1']
    #allocation4 [shape = 's32[1]{0}', space=sflag, size = 0x4, scoped, tag = 'scoped memory for tpu_custom_call.1']
    #allocation5 [shape = 'u8[4096]{0}', space=vmem, size = 0x1000, scoped, tag = 'input window, operand 1, single buffered']
    #allocation6 [shape = 's32[1]{0}', space=sflag, size = 0x4, scoped, tag = 'scoped memory for tpu_custom_call.1']
    #allocation7 [shape = 'u8[262144]{0}', space=vmem, size = 0x40000, scoped, tag = 'input window, operand 2, single buffered']
    #allocation8 [shape = 'u8[4096]{0}', space=vmem, size = 0x1000, scoped, tag = 'input window, operand 3, single buffered']
    #allocation9 [shape = 's32[1]{0}', space=sflag, size = 0x4, scoped, tag = 'scoped memory for tpu_custom_call.1']
    #allocation10 [shape = 'u8[262144]{0}', space=vmem, size = 0x40000, scoped, tag = 'input window, operand 4, single buffered']
    #allocation11 [shape = 'u8[4096]{0}', space=vmem, size = 0x1000, scoped, tag = 'input window, operand 5, single buffered']
    #allocation12 [shape = 's32[1]{0}', space=sflag, size = 0x4, scoped, tag = 'scoped memory for tpu_custom_call.1']
    #allocation13 [shape = 'u8[65536]{0}', space=vmem, size = 0x10000, scoped, tag = 'input window, operand 6, single buffered']
    #allocation14 [shape = 'u8[16384]{0}', space=vmem, size = 0x4000, scoped, tag = 'output window, operand 0, single buffered']
    %13 = vsyncpa [#allocation3], 0
    %14 = vsyncpa [#allocation6], 0
    %15 = vsyncpa [#allocation9], 0
    %16 = vsyncpa [#allocation12], 0
    %17 = vsyncpa [#allocation4], 0
    // Predicated region
    $region2: #{tpu_custom_call.1} parent=1 // pred_check
      _
    $region3: #{tpu_custom_call.1} parent=1 // pred_check_branch
      %19 = sbr.rel (0) target = $region5
    $region4: #{tpu_custom_call.1} parent=1 // pred_region
      %21 = vsyncadd [#allocation3], 0
      %s22 = sshll.u32 %s0, 4
      %s23 = int_to_ptr.hbm [resolvable:$true] %s22
      %s24 = sshll.u32 [#allocation2], 4
      %s25 = int_to_ptr.vmem [resolvable:$true] %s24
      %30 = dma.hbm_to_vmem [thread:$0]  %s23, 128, %s25, [#allocation3], 64, 64, 4
    $region5: #{tpu_custom_call.1} parent=1 // pred_fallthru
      _
    // Predicated region
    $region6: #{tpu_custom_call.1} parent=1 // pred_check
      _
    $region7: #{tpu_custom_call.1} parent=1 // pred_check_branch
      %32 = sbr.rel (0) target = $region9
    $region8: #{tpu_custom_call.1} parent=1 // pred_region
      %34 = vsyncadd [#allocation6], 0
      %s35 = sshll.u32 %s1, 4
      %s36 = int_to_ptr.hbm [resolvable:$true] %s35
      %s37 = sshll.u32 [#allocation5], 4
      %s38 = int_to_ptr.vmem [resolvable:$true] %s37
      %43 = dma.hbm_to_vmem [thread:$0]  %s36, 128, %s38, [#allocation6], 64, 64, 4
    $region9: #{tpu_custom_call.1} parent=1 // pred_fallthru
      _
    // Predicated region
    $region10: #{tpu_custom_call.1} parent=1 // pred_check
      _
    $region11: #{tpu_custom_call.1} parent=1 // pred_check_branch
      %45 = sbr.rel (0) target = $region13
    $region12: #{tpu_custom_call.1} parent=1 // pred_region
      %47 = vsyncadd [#allocation6], 0
      %s48 = sshll.u32 %s2, 4
      %s49 = int_to_ptr.hbm [resolvable:$true] %s48
      %s50 = sshll.u32 [#allocation7], 4
      %s51 = int_to_ptr.vmem [resolvable:$true] %s50
      %56 = dma.hbm_to_vmem [thread:$0]  %s49, 8192, %s51, [#allocation6], 512, 512, 32
    $region13: #{tpu_custom_call.1} parent=1 // pred_fallthru
      _
    // Predicated region
    $region14: #{tpu_custom_call.1} parent=1 // pred_check
      _
    $region15: #{tpu_custom_call.1} parent=1 // pred_check_branch
      %58 = sbr.rel (0) target = $region17
    $region16: #{tpu_custom_call.1} parent=1 // pred_region
      %60 = vsyncadd [#allocation9], 0
      %s62 = sshll.u32 %s3, 4
      %s63 = int_to_ptr.hbm [resolvable:$true] %s62
      %s64 = sshll.u32 [#allocation8], 4
      %s65 = int_to_ptr.vmem [resolvable:$true] %s64
      %67 = dma.hbm_to_vmem [thread:$0]  %s63, 128, %s65, [#allocation9]
    $region17: #{tpu_custom_call.1} parent=1 // pred_fallthru
      _
    // Predicated region
    $region18: #{tpu_custom_call.1} parent=1 // pred_check
      _
    $region19: #{tpu_custom_call.1} parent=1 // pred_check_branch
      %69 = sbr.rel (0) target = $region21
    $region20: #{tpu_custom_call.1} parent=1 // pred_region
      %71 = vsyncadd [#allocation9], 0
      %s72 = sshll.u32 %s4, 4
      %s73 = int_to_ptr.hbm [resolvable:$true] %s72
      %s74 = sshll.u32 [#allocation10], 4
      %s75 = int_to_ptr.vmem [resolvable:$true] %s74
      %80 = dma.hbm_to_vmem [thread:$0]  %s73, 8192, %s75, [#allocation9], 512, 512, 32
    $region21: #{tpu_custom_call.1} parent=1 // pred_fallthru
      _
    // Predicated region
    $region22: #{tpu_custom_call.1} parent=1 // pred_check
      _
    $region23: #{tpu_custom_call.1} parent=1 // pred_check_branch
      %82 = sbr.rel (0) target = $region25
    $region24: #{tpu_custom_call.1} parent=1 // pred_region
      %84 = vsyncadd [#allocation12], 0
      %s86 = sshll.u32 %s5, 4
      %s87 = int_to_ptr.hbm [resolvable:$true] %s86
      %s88 = sshll.u32 [#allocation11], 4
      %s89 = int_to_ptr.vmem [resolvable:$true] %s88
      %91 = dma.hbm_to_vmem [thread:$0]  %s87, 128, %s89, [#allocation12]
    $region25: #{tpu_custom_call.1} parent=1 // pred_fallthru
      _
    // Predicated region
    $region26: #{tpu_custom_call.1} parent=1 // pred_check
      _
    $region27: #{tpu_custom_call.1} parent=1 // pred_check_branch
      %93 = sbr.rel (0) target = $region29
    $region28: #{tpu_custom_call.1} parent=1 // pred_region
      %95 = vsyncadd [#allocation12], 0
      %s96 = sshll.u32 %s6, 4
      %s97 = int_to_ptr.hbm [resolvable:$true] %s96
      %s98 = sshll.u32 [#allocation13], 4
      %s99 = int_to_ptr.vmem [resolvable:$true] %s98
      %104 = dma.hbm_to_vmem [thread:$0]  %s97, 2048, %s99, [#allocation12], 128, 128, 8
    $region29: #{tpu_custom_call.1} parent=1 // pred_fallthru
      _
    // Predicated region
    $region30: #{tpu_custom_call.1} parent=1 // pred_check
      _
    $region31: #{tpu_custom_call.1} parent=1 // pred_check_branch
      %106 = sbr.rel (0) target = $region33
    $region32: #{tpu_custom_call.1} parent=1 // pred_region
      _
    $region33: #{tpu_custom_call.1} parent=1 // pred_fallthru
      _
    // Predicated region
    $region34: #{tpu_custom_call.1} parent=1 // pred_check
      _
    $region35: #{tpu_custom_call.1} parent=1 // pred_check_branch
      %108 = sbr.rel (0) target = $region37
    $region36: #{tpu_custom_call.1} parent=1 // pred_region
      %110 = dma.done [#allocation3], 128
    $region37: #{tpu_custom_call.1} parent=1 // pred_fallthru
      _
    // Predicated region
    $region38: #{tpu_custom_call.1} parent=1 // pred_check
      _
    $region39: #{tpu_custom_call.1} parent=1 // pred_check_branch
      %112 = sbr.rel (0) target = $region41
    $region40: #{tpu_custom_call.1} parent=1 // pred_region
      %114 = dma.done [#allocation6], 128
    $region41: #{tpu_custom_call.1} parent=1 // pred_fallthru
      _
    // Predicated region
    $region42: #{tpu_custom_call.1} parent=1 // pred_check
      _
    $region43: #{tpu_custom_call.1} parent=1 // pred_check_branch
      %116 = sbr.rel (0) target = $region45
    $region44: #{tpu_custom_call.1} parent=1 // pred_region
      %118 = dma.done [#allocation6], 8192
    $region45: #{tpu_custom_call.1} parent=1 // pred_fallthru
      _
    // Predicated region
    $region46: #{tpu_custom_call.1} parent=1 // pred_check
      _
    $region47: #{tpu_custom_call.1} parent=1 // pred_check_branch
      %120 = sbr.rel (0) target = $region49
    $region48: #{tpu_custom_call.1} parent=1 // pred_region
      %122 = dma.done [#allocation9], 128
    $region49: #{tpu_custom_call.1} parent=1 // pred_fallthru
      _
    // Predicated region
    $region50: #{tpu_custom_call.1} parent=1 // pred_check
      _
    $region51: #{tpu_custom_call.1} parent=1 // pred_check_branch
      %124 = sbr.rel (0) target = $region53
    $region52: #{tpu_custom_call.1} parent=1 // pred_region
      %126 = dma.done [#allocation9], 8192
    $region53: #{tpu_custom_call.1} parent=1 // pred_fallthru
      _
    // Predicated region
    $region54: #{tpu_custom_call.1} parent=1 // pred_check
      _
    $region55: #{tpu_custom_call.1} parent=1 // pred_check_branch
      %128 = sbr.rel (0) target = $region57
    $region56: #{tpu_custom_call.1} parent=1 // pred_region
      %130 = dma.done [#allocation12], 128
    $region57: #{tpu_custom_call.1} parent=1 // pred_fallthru
      _
    // Predicated region
    $region58: #{tpu_custom_call.1} parent=1 // pred_check
      _
    $region59: #{tpu_custom_call.1} parent=1 // pred_check_branch
      %132 = sbr.rel (0) target = $region61
    $region60: #{tpu_custom_call.1} parent=1 // pred_region
      %134 = dma.done [#allocation12], 2048
    $region61: #{tpu_custom_call.1} parent=1 // pred_fallthru
      _
    %v135 = vld [vmem:[#allocation2] sm:$0xf]
    %v136 = vld [vmem:[#allocation2 + $0x4] sm:$0xf]
    %v137 = vld [vmem:[#allocation7] sm:$0xff]
    %v138 = vld [vmem:[#allocation7 + $0x8] sm:$0xff]
    %v139 = vld [vmem:[#allocation7 + $0x10] sm:$0xff]
    %v140 = vld [vmem:[#allocation7 + $0x18] sm:$0xff]
    %v141 = vld [vmem:[#allocation7 + $0x20] sm:$0xff]
    %v142 = vld [vmem:[#allocation7 + $0x28] sm:$0xff]
    %v143 = vld [vmem:[#allocation7 + $0x30] sm:$0xff]
    %v144 = vld [vmem:[#allocation7 + $0x38] sm:$0xff]
    %v145 = vld [vmem:[#allocation7 + $0x40] sm:$0xff]
    %v146 = vld [vmem:[#allocation7 + $0x48] sm:$0xff]
    %v147 = vld [vmem:[#allocation7 + $0x50] sm:$0xff]
    %v148 = vld [vmem:[#allocation7 + $0x58] sm:$0xff]
    %v149 = vld [vmem:[#allocation7 + $0x60] sm:$0xff]
    %v150 = vld [vmem:[#allocation7 + $0x68] sm:$0xff]
    %v151 = vld [vmem:[#allocation7 + $0x70] sm:$0xff]
    %v152 = vld [vmem:[#allocation7 + $0x78] sm:$0xff]
    %v153 = vld [vmem:[#allocation7 + $0x80] sm:$0xff]
    %v154 = vld [vmem:[#allocation7 + $0x88] sm:$0xff]
    %v155 = vld [vmem:[#allocation7 + $0x90] sm:$0xff]
    %v156 = vld [vmem:[#allocation7 + $0x98] sm:$0xff]
    %v157 = vld [vmem:[#allocation7 + $0xa0] sm:$0xff]
    %v158 = vld [vmem:[#allocation7 + $0xa8] sm:$0xff]
    %v159 = vld [vmem:[#allocation7 + $0xb0] sm:$0xff]
    %v160 = vld [vmem:[#allocation7 + $0xb8] sm:$0xff]
    %v161 = vld [vmem:[#allocation7 + $0xc0] sm:$0xff]
    %v162 = vld [vmem:[#allocation7 + $0xc8] sm:$0xff]
    %v163 = vld [vmem:[#allocation7 + $0xd0] sm:$0xff]
    %v164 = vld [vmem:[#allocation7 + $0xd8] sm:$0xff]
    %v165 = vld [vmem:[#allocation7 + $0xe0] sm:$0xff]
    %v166 = vld [vmem:[#allocation7 + $0xe8] sm:$0xff]
    %v167 = vld [vmem:[#allocation7 + $0xf0] sm:$0xff]
    %v168 = vld [vmem:[#allocation7 + $0xf8] sm:$0xff]
    %v169 = vld [vmem:[#allocation7 + $0x100] sm:$0xff]
    %v170 = vld [vmem:[#allocation7 + $0x108] sm:$0xff]
    %v171 = vld [vmem:[#allocation7 + $0x110] sm:$0xff]
    %v172 = vld [vmem:[#allocation7 + $0x118] sm:$0xff]
    %v173 = vld [vmem:[#allocation7 + $0x120] sm:$0xff]
    %v174 = vld [vmem:[#allocation7 + $0x128] sm:$0xff]
    %v175 = vld [vmem:[#allocation7 + $0x130] sm:$0xff]
    %v176 = vld [vmem:[#allocation7 + $0x138] sm:$0xff]
    %v177 = vld [vmem:[#allocation7 + $0x140] sm:$0xff]
    %v178 = vld [vmem:[#allocation7 + $0x148] sm:$0xff]
    %v179 = vld [vmem:[#allocation7 + $0x150] sm:$0xff]
    %v180 = vld [vmem:[#allocation7 + $0x158] sm:$0xff]
    %v181 = vld [vmem:[#allocation7 + $0x160] sm:$0xff]
    %v182 = vld [vmem:[#allocation7 + $0x168] sm:$0xff]
    %v183 = vld [vmem:[#allocation7 + $0x170] sm:$0xff]
    %v184 = vld [vmem:[#allocation7 + $0x178] sm:$0xff]
    %v185 = vld [vmem:[#allocation7 + $0x180] sm:$0xff]
    %v186 = vld [vmem:[#allocation7 + $0x188] sm:$0xff]
    %v187 = vld [vmem:[#allocation7 + $0x190] sm:$0xff]
    %v188 = vld [vmem:[#allocation7 + $0x198] sm:$0xff]
    %v189 = vld [vmem:[#allocation7 + $0x1a0] sm:$0xff]
    %v190 = vld [vmem:[#allocation7 + $0x1a8] sm:$0xff]
    %v191 = vld [vmem:[#allocation7 + $0x1b0] sm:$0xff]
    %v192 = vld [vmem:[#allocation7 + $0x1b8] sm:$0xff]
    %v193 = vld [vmem:[#allocation7 + $0x1c0] sm:$0xff]
    %v194 = vld [vmem:[#allocation7 + $0x1c8] sm:$0xff]
    %v195 = vld [vmem:[#allocation7 + $0x1d0] sm:$0xff]
    %v196 = vld [vmem:[#allocation7 + $0x1d8] sm:$0xff]
    %v197 = vld [vmem:[#allocation7 + $0x1e0] sm:$0xff]
    %v198 = vld [vmem:[#allocation7 + $0x1e8] sm:$0xff]
    %v199 = vld [vmem:[#allocation7 + $0x1f0] sm:$0xff]
    %v200 = vld [vmem:[#allocation7 + $0x1f8] sm:$0xff]
    %v201 = vld [vmem:[#allocation8] sm:$0xff]
    %v203 = vperm.slane %v201, 0
    %v204 = vperm.slane %v201, 1
    %v205 = vperm.slane %v201, 2
    %v206 = vperm.slane %v201, 3
    %v207 = vperm.slane %v201, 4
    %v208 = vperm.slane %v201, 5
    %v209 = vperm.slane %v201, 6
    %v210 = vperm.slane %v201, 7
    %v221 = vunpack.c.l.b16 %v135
    %v222 = vunpack.c.l.b16 %v136
    %v223 = vpack.c.b16 %v222, %v221
    %v289 = vunpack.c.l.b16 %v137
    %v290 = vunpack.c.h.b16 %v137
    %v291 = vunpack.c.l.b16 %v138
    %v292 = vunpack.c.h.b16 %v138
    %v293 = vunpack.c.l.b16 %v139
    %v294 = vunpack.c.h.b16 %v139
    %v295 = vunpack.c.l.b16 %v140
    %v296 = vunpack.c.h.b16 %v140
    %v297 = vunpack.c.l.b16 %v141
    %v298 = vunpack.c.h.b16 %v141
    %v299 = vunpack.c.l.b16 %v142
    %v300 = vunpack.c.h.b16 %v142
    %v301 = vunpack.c.l.b16 %v143
    %v302 = vunpack.c.h.b16 %v143
    %v303 = vunpack.c.l.b16 %v144
    %v304 = vunpack.c.h.b16 %v144
    %v305 = vunpack.c.l.b16 %v145
    %v306 = vunpack.c.h.b16 %v145
    %v307 = vunpack.c.l.b16 %v146
    %v308 = vunpack.c.h.b16 %v146
    %v309 = vunpack.c.l.b16 %v147
    %v310 = vunpack.c.h.b16 %v147
    %v311 = vunpack.c.l.b16 %v148
    %v312 = vunpack.c.h.b16 %v148
    %v313 = vunpack.c.l.b16 %v149
    %v314 = vunpack.c.h.b16 %v149
    %v315 = vunpack.c.l.b16 %v150
    %v316 = vunpack.c.h.b16 %v150
    %v317 = vunpack.c.l.b16 %v151
    %v318 = vunpack.c.h.b16 %v151
    %v319 = vunpack.c.l.b16 %v152
    %v320 = vunpack.c.h.b16 %v152
    %v321 = vunpack.c.l.b16 %v153
    %v322 = vunpack.c.h.b16 %v153
    %v323 = vunpack.c.l.b16 %v154
    %v324 = vunpack.c.h.b16 %v154
    %v325 = vunpack.c.l.b16 %v155
    %v326 = vunpack.c.h.b16 %v155
    %v327 = vunpack.c.l.b16 %v156
    %v328 = vunpack.c.h.b16 %v156
    %v329 = vunpack.c.l.b16 %v157
    %v330 = vunpack.c.h.b16 %v157
    %v331 = vunpack.c.l.b16 %v158
    %v332 = vunpack.c.h.b16 %v158
    %v333 = vunpack.c.l.b16 %v159
    %v334 = vunpack.c.h.b16 %v159
    %v335 = vunpack.c.l.b16 %v160
    %v336 = vunpack.c.h.b16 %v160
    %v337 = vunpack.c.l.b16 %v161
    %v338 = vunpack.c.h.b16 %v161
    %v339 = vunpack.c.l.b16 %v162
    %v340 = vunpack.c.h.b16 %v162
    %v341 = vunpack.c.l.b16 %v163
    %v342 = vunpack.c.h.b16 %v163
    %v343 = vunpack.c.l.b16 %v164
    %v344 = vunpack.c.h.b16 %v164
    %v345 = vunpack.c.l.b16 %v165
    %v346 = vunpack.c.h.b16 %v165
    %v347 = vunpack.c.l.b16 %v166
    %v348 = vunpack.c.h.b16 %v166
    %v349 = vunpack.c.l.b16 %v167
    %v350 = vunpack.c.h.b16 %v167
    %v351 = vunpack.c.l.b16 %v168
    %v352 = vunpack.c.h.b16 %v168
    %v353 = vunpack.c.l.b16 %v169
    %v354 = vunpack.c.h.b16 %v169
    %v355 = vunpack.c.l.b16 %v170
    %v356 = vunpack.c.h.b16 %v170
    %v357 = vunpack.c.l.b16 %v171
    %v358 = vunpack.c.h.b16 %v171
    %v359 = vunpack.c.l.b16 %v172
    %v360 = vunpack.c.h.b16 %v172
    %v361 = vunpack.c.l.b16 %v173
    %v362 = vunpack.c.h.b16 %v173
    %v363 = vunpack.c.l.b16 %v174
    %v364 = vunpack.c.h.b16 %v174
    %v365 = vunpack.c.l.b16 %v175
    %v366 = vunpack.c.h.b16 %v175
    %v367 = vunpack.c.l.b16 %v176
    %v368 = vunpack.c.h.b16 %v176
    %v369 = vunpack.c.l.b16 %v177
    %v370 = vunpack.c.h.b16 %v177
    %v371 = vunpack.c.l.b16 %v178
    %v372 = vunpack.c.h.b16 %v178
    %v373 = vunpack.c.l.b16 %v179
    %v374 = vunpack.c.h.b16 %v179
    %v375 = vunpack.c.l.b16 %v180
    %v376 = vunpack.c.h.b16 %v180
    %v377 = vunpack.c.l.b16 %v181
    %v378 = vunpack.c.h.b16 %v181
    %v379 = vunpack.c.l.b16 %v182
    %v380 = vunpack.c.h.b16 %v182
    %v381 = vunpack.c.l.b16 %v183
    %v382 = vunpack.c.h.b16 %v183
    %v383 = vunpack.c.l.b16 %v184
    %v384 = vunpack.c.h.b16 %v184
    %v385 = vunpack.c.l.b16 %v185
    %v386 = vunpack.c.h.b16 %v185
    %v387 = vunpack.c.l.b16 %v186
    %v388 = vunpack.c.h.b16 %v186
    %v389 = vunpack.c.l.b16 %v187
    %v390 = vunpack.c.h.b16 %v187
    %v391 = vunpack.c.l.b16 %v188
    %v392 = vunpack.c.h.b16 %v188
    %v393 = vunpack.c.l.b16 %v189
    %v394 = vunpack.c.h.b16 %v189
    %v395 = vunpack.c.l.b16 %v190
    %v396 = vunpack.c.h.b16 %v190
    %v397 = vunpack.c.l.b16 %v191
    %v398 = vunpack.c.h.b16 %v191
    %v399 = vunpack.c.l.b16 %v192
    %v400 = vunpack.c.h.b16 %v192
    %v401 = vunpack.c.l.b16 %v193
    %v402 = vunpack.c.h.b16 %v193
    %v403 = vunpack.c.l.b16 %v194
    %v404 = vunpack.c.h.b16 %v194
    %v405 = vunpack.c.l.b16 %v195
    %v406 = vunpack.c.h.b16 %v195
    %v407 = vunpack.c.l.b16 %v196
    %v408 = vunpack.c.h.b16 %v196
    %v409 = vunpack.c.l.b16 %v197
    %v410 = vunpack.c.h.b16 %v197
    %v411 = vunpack.c.l.b16 %v198
    %v412 = vunpack.c.h.b16 %v198
    %v413 = vunpack.c.l.b16 %v199
    %v414 = vunpack.c.h.b16 %v199
    %v415 = vunpack.c.l.b16 %v200
    %v416 = vunpack.c.h.b16 %v200
    %v417 = vpack.c.b16 %v297, %v289
    %v418 = vpack.c.b16 %v298, %v290
    %v419 = vpack.c.b16 %v299, %v291
    %v420 = vpack.c.b16 %v300, %v292
    %v421 = vpack.c.b16 %v301, %v293
    %v422 = vpack.c.b16 %v302, %v294
    %v423 = vpack.c.b16 %v303, %v295
    %v424 = vpack.c.b16 %v304, %v296
    %v425 = vpack.c.b16 %v313, %v305
    %v426 = vpack.c.b16 %v314, %v306
    %v427 = vpack.c.b16 %v315, %v307
    %v428 = vpack.c.b16 %v316, %v308
    %v429 = vpack.c.b16 %v317, %v309
    %v430 = vpack.c.b16 %v318, %v310
    %v431 = vpack.c.b16 %v319, %v311
    %v432 = vpack.c.b16 %v320, %v312
    %v433 = vpack.c.b16 %v329, %v321
    %v434 = vpack.c.b16 %v330, %v322
    %v435 = vpack.c.b16 %v331, %v323
    %v436 = vpack.c.b16 %v332, %v324
    %v437 = vpack.c.b16 %v333, %v325
    %v438 = vpack.c.b16 %v334, %v326
    %v439 = vpack.c.b16 %v335, %v327
    %v440 = vpack.c.b16 %v336, %v328
    %v441 = vpack.c.b16 %v345, %v337
    %v442 = vpack.c.b16 %v346, %v338
    %v443 = vpack.c.b16 %v347, %v339
    %v444 = vpack.c.b16 %v348, %v340
    %v445 = vpack.c.b16 %v349, %v341
    %v446 = vpack.c.b16 %v350, %v342
    %v447 = vpack.c.b16 %v351, %v343
    %v448 = vpack.c.b16 %v352, %v344
    %v449 = vpack.c.b16 %v361, %v353
    %v450 = vpack.c.b16 %v362, %v354
    %v451 = vpack.c.b16 %v363, %v355
    %v452 = vpack.c.b16 %v364, %v356
    %v453 = vpack.c.b16 %v365, %v357
    %v454 = vpack.c.b16 %v366, %v358
    %v455 = vpack.c.b16 %v367, %v359
    %v456 = vpack.c.b16 %v368, %v360
    %v457 = vpack.c.b16 %v377, %v369
    %v458 = vpack.c.b16 %v378, %v370
    %v459 = vpack.c.b16 %v379, %v371
    %v460 = vpack.c.b16 %v380, %v372
    %v461 = vpack.c.b16 %v381, %v373
    %v462 = vpack.c.b16 %v382, %v374
    %v463 = vpack.c.b16 %v383, %v375
    %v464 = vpack.c.b16 %v384, %v376
    %v465 = vpack.c.b16 %v393, %v385
    %v466 = vpack.c.b16 %v394, %v386
    %v467 = vpack.c.b16 %v395, %v387
    %v468 = vpack.c.b16 %v396, %v388
    %v469 = vpack.c.b16 %v397, %v389
    %v470 = vpack.c.b16 %v398, %v390
    %v471 = vpack.c.b16 %v399, %v391
    %v472 = vpack.c.b16 %v400, %v392
    %v473 = vpack.c.b16 %v409, %v401
    %v474 = vpack.c.b16 %v410, %v402
    %v475 = vpack.c.b16 %v411, %v403
    %v476 = vpack.c.b16 %v412, %v404
    %v477 = vpack.c.b16 %v413, %v405
    %v478 = vpack.c.b16 %v414, %v406
    %v479 = vpack.c.b16 %v415, %v407
    %v480 = vpack.c.b16 %v416, %v408
    %545 = vmatpush.bf16.msra.mxu0 %v473
    %546 = vmatpush.bf16.msra.mxu0 %v465
    %547 = vmatpush.bf16.msra.mxu0 %v457
    %548 = vmatpush.bf16.msra.mxu0 %v449
    %549 = vmatpush.bf16.msra.mxu0 %v441
    %550 = vmatpush.bf16.msra.mxu0 %v433
    %551 = vmatpush.bf16.msra.mxu0 %v425
    %552 = vmatpush.bf16.msra.mxu0 %v417
    %553 = vmatmul.bf16.gmra.mxu0 %v223
    %v554 = vpop.f32.mrf.mxu0
    %v555 = vadd.f32 %v203, %v554
    %v556 = vpop.f32.mrf.mxu0
    %v557 = vadd.f32 %v203, %v556
    %558 = vdwg.mxu0
    %559 = vmatpush.bf16.msra.mxu0 %v474
    %560 = vmatpush.bf16.msra.mxu0 %v466
    %561 = vmatpush.bf16.msra.mxu0 %v458
    %562 = vmatpush.bf16.msra.mxu0 %v450
    %563 = vmatpush.bf16.msra.mxu0 %v442
    %564 = vmatpush.bf16.msra.mxu0 %v434
    %565 = vmatpush.bf16.msra.mxu0 %v426
    %566 = vmatpush.bf16.msra.mxu0 %v418
    %567 = vmatmul.bf16.gmra.mxu0 %v223
    %v568 = vpop.f32.mrf.mxu0
    %v569 = vadd.f32 %v204, %v568
    %v570 = vpop.f32.mrf.mxu0
    %v571 = vadd.f32 %v204, %v570
    %572 = vdwg.mxu0
    %573 = vmatpush.bf16.msra.mxu0 %v475
    %574 = vmatpush.bf16.msra.mxu0 %v467
    %575 = vmatpush.bf16.msra.mxu0 %v459
    %576 = vmatpush.bf16.msra.mxu0 %v451
    %577 = vmatpush.bf16.msra.mxu0 %v443
    %578 = vmatpush.bf16.msra.mxu0 %v435
    %579 = vmatpush.bf16.msra.mxu0 %v427
    %580 = vmatpush.bf16.msra.mxu0 %v419
    %581 = vmatmul.bf16.gmra.mxu0 %v223
    %v582 = vpop.f32.mrf.mxu0
    %v583 = vadd.f32 %v205, %v582
    %v584 = vpop.f32.mrf.mxu0
    %v585 = vadd.f32 %v205, %v584
    %586 = vdwg.mxu0
    %587 = vmatpush.bf16.msra.mxu0 %v476
    %588 = vmatpush.bf16.msra.mxu0 %v468
    %589 = vmatpush.bf16.msra.mxu0 %v460
    %590 = vmatpush.bf16.msra.mxu0 %v452
    %591 = vmatpush.bf16.msra.mxu0 %v444
    %592 = vmatpush.bf16.msra.mxu0 %v436
    %593 = vmatpush.bf16.msra.mxu0 %v428
    %594 = vmatpush.bf16.msra.mxu0 %v420
    %595 = vmatmul.bf16.gmra.mxu0 %v223
    %v596 = vpop.f32.mrf.mxu0
    %v597 = vadd.f32 %v206, %v596
    %v598 = vpop.f32.mrf.mxu0
    %v599 = vadd.f32 %v206, %v598
    %600 = vdwg.mxu0
    %601 = vmatpush.bf16.msra.mxu0 %v477
    %602 = vmatpush.bf16.msra.mxu0 %v469
    %603 = vmatpush.bf16.msra.mxu0 %v461
    %604 = vmatpush.bf16.msra.mxu0 %v453
    %605 = vmatpush.bf16.msra.mxu0 %v445
    %606 = vmatpush.bf16.msra.mxu0 %v437
    %607 = vmatpush.bf16.msra.mxu0 %v429
    %608 = vmatpush.bf16.msra.mxu0 %v421
    %609 = vmatmul.bf16.gmra.mxu0 %v223
    %v610 = vpop.f32.mrf.mxu0
    %v611 = vadd.f32 %v207, %v610
    %v612 = vpop.f32.mrf.mxu0
    %v613 = vadd.f32 %v207, %v612
    %614 = vdwg.mxu0
    %615 = vmatpush.bf16.msra.mxu0 %v478
    %616 = vmatpush.bf16.msra.mxu0 %v470
    %617 = vmatpush.bf16.msra.mxu0 %v462
    %618 = vmatpush.bf16.msra.mxu0 %v454
    %619 = vmatpush.bf16.msra.mxu0 %v446
    %620 = vmatpush.bf16.msra.mxu0 %v438
    %621 = vmatpush.bf16.msra.mxu0 %v430
    %622 = vmatpush.bf16.msra.mxu0 %v422
    %623 = vmatmul.bf16.gmra.mxu0 %v223
    %v624 = vpop.f32.mrf.mxu0
    %v625 = vadd.f32 %v208, %v624
    %v626 = vpop.f32.mrf.mxu0
    %v627 = vadd.f32 %v208, %v626
    %628 = vdwg.mxu0
    %629 = vmatpush.bf16.msra.mxu0 %v479
    %630 = vmatpush.bf16.msra.mxu0 %v471
    %631 = vmatpush.bf16.msra.mxu0 %v463
    %632 = vmatpush.bf16.msra.mxu0 %v455
    %633 = vmatpush.bf16.msra.mxu0 %v447
    %634 = vmatpush.bf16.msra.mxu0 %v439
    %635 = vmatpush.bf16.msra.mxu0 %v431
    %636 = vmatpush.bf16.msra.mxu0 %v423
    %637 = vmatmul.bf16.gmra.mxu0 %v223
    %v638 = vpop.f32.mrf.mxu0
    %v639 = vadd.f32 %v209, %v638
    %v640 = vpop.f32.mrf.mxu0
    %v641 = vadd.f32 %v209, %v640
    %642 = vdwg.mxu0
    %643 = vmatpush.bf16.msra.mxu0 %v480
    %644 = vmatpush.bf16.msra.mxu0 %v472
    %645 = vmatpush.bf16.msra.mxu0 %v464
    %646 = vmatpush.bf16.msra.mxu0 %v456
    %647 = vmatpush.bf16.msra.mxu0 %v448
    %648 = vmatpush.bf16.msra.mxu0 %v440
    %649 = vmatpush.bf16.msra.mxu0 %v432
    %650 = vmatpush.bf16.msra.mxu0 %v424
    %651 = vmatmul.bf16.gmra.mxu0 %v223
    %v652 = vpop.f32.mrf.mxu0
    %v653 = vadd.f32 %v210, %v652
    %v654 = vpop.f32.mrf.mxu0
    %v655 = vadd.f32 %v210, %v654
    %656 = vdwg.mxu0
    %v657 = vld [vmem:[#allocation5] sm:$0xf]
    %v658 = vld [vmem:[#allocation5 + $0x4] sm:$0xf]
    %v659 = vld [vmem:[#allocation10] sm:$0xff]
    %v660 = vld [vmem:[#allocation10 + $0x8] sm:$0xff]
    %v661 = vld [vmem:[#allocation10 + $0x10] sm:$0xff]
    %v662 = vld [vmem:[#allocation10 + $0x18] sm:$0xff]
    %v663 = vld [vmem:[#allocation10 + $0x20] sm:$0xff]
    %v664 = vld [vmem:[#allocation10 + $0x28] sm:$0xff]
    %v665 = vld [vmem:[#allocation10 + $0x30] sm:$0xff]
    %v666 = vld [vmem:[#allocation10 + $0x38] sm:$0xff]
    %v667 = vld [vmem:[#allocation10 + $0x40] sm:$0xff]
    %v668 = vld [vmem:[#allocation10 + $0x48] sm:$0xff]
    %v669 = vld [vmem:[#allocation10 + $0x50] sm:$0xff]
    %v670 = vld [vmem:[#allocation10 + $0x58] sm:$0xff]
    %v671 = vld [vmem:[#allocation10 + $0x60] sm:$0xff]
    %v672 = vld [vmem:[#allocation10 + $0x68] sm:$0xff]
    %v673 = vld [vmem:[#allocation10 + $0x70] sm:$0xff]
    %v674 = vld [vmem:[#allocation10 + $0x78] sm:$0xff]
    %v675 = vld [vmem:[#allocation10 + $0x80] sm:$0xff]
    %v676 = vld [vmem:[#allocation10 + $0x88] sm:$0xff]
    %v677 = vld [vmem:[#allocation10 + $0x90] sm:$0xff]
    %v678 = vld [vmem:[#allocation10 + $0x98] sm:$0xff]
    %v679 = vld [vmem:[#allocation10 + $0xa0] sm:$0xff]
    %v680 = vld [vmem:[#allocation10 + $0xa8] sm:$0xff]
    %v681 = vld [vmem:[#allocation10 + $0xb0] sm:$0xff]
    %v682 = vld [vmem:[#allocation10 + $0xb8] sm:$0xff]
    %v683 = vld [vmem:[#allocation10 + $0xc0] sm:$0xff]
    %v684 = vld [vmem:[#allocation10 + $0xc8] sm:$0xff]
    %v685 = vld [vmem:[#allocation10 + $0xd0] sm:$0xff]
    %v686 = vld [vmem:[#allocation10 + $0xd8] sm:$0xff]
    %v687 = vld [vmem:[#allocation10 + $0xe0] sm:$0xff]
    %v688 = vld [vmem:[#allocation10 + $0xe8] sm:$0xff]
    %v689 = vld [vmem:[#allocation10 + $0xf0] sm:$0xff]
    %v690 = vld [vmem:[#allocation10 + $0xf8] sm:$0xff]
    %v691 = vld [vmem:[#allocation10 + $0x100] sm:$0xff]
    %v692 = vld [vmem:[#allocation10 + $0x108] sm:$0xff]
    %v693 = vld [vmem:[#allocation10 + $0x110] sm:$0xff]
    %v694 = vld [vmem:[#allocation10 + $0x118] sm:$0xff]
    %v695 = vld [vmem:[#allocation10 + $0x120] sm:$0xff]
    %v696 = vld [vmem:[#allocation10 + $0x128] sm:$0xff]
    %v697 = vld [vmem:[#allocation10 + $0x130] sm:$0xff]
    %v698 = vld [vmem:[#allocation10 + $0x138] sm:$0xff]
    %v699 = vld [vmem:[#allocation10 + $0x140] sm:$0xff]
    %v700 = vld [vmem:[#allocation10 + $0x148] sm:$0xff]
    %v701 = vld [vmem:[#allocation10 + $0x150] sm:$0xff]
    %v702 = vld [vmem:[#allocation10 + $0x158] sm:$0xff]
    %v703 = vld [vmem:[#allocation10 + $0x160] sm:$0xff]
    %v704 = vld [vmem:[#allocation10 + $0x168] sm:$0xff]
    %v705 = vld [vmem:[#allocation10 + $0x170] sm:$0xff]
    %v706 = vld [vmem:[#allocation10 + $0x178] sm:$0xff]
    %v707 = vld [vmem:[#allocation10 + $0x180] sm:$0xff]
    %v708 = vld [vmem:[#allocation10 + $0x188] sm:$0xff]
    %v709 = vld [vmem:[#allocation10 + $0x190] sm:$0xff]
    %v710 = vld [vmem:[#allocation10 + $0x198] sm:$0xff]
    %v711 = vld [vmem:[#allocation10 + $0x1a0] sm:$0xff]
    %v712 = vld [vmem:[#allocation10 + $0x1a8] sm:$0xff]
    %v713 = vld [vmem:[#allocation10 + $0x1b0] sm:$0xff]
    %v714 = vld [vmem:[#allocation10 + $0x1b8] sm:$0xff]
    %v715 = vld [vmem:[#allocation10 + $0x1c0] sm:$0xff]
    %v716 = vld [vmem:[#allocation10 + $0x1c8] sm:$0xff]
    %v717 = vld [vmem:[#allocation10 + $0x1d0] sm:$0xff]
    %v718 = vld [vmem:[#allocation10 + $0x1d8] sm:$0xff]
    %v719 = vld [vmem:[#allocation10 + $0x1e0] sm:$0xff]
    %v720 = vld [vmem:[#allocation10 + $0x1e8] sm:$0xff]
    %v721 = vld [vmem:[#allocation10 + $0x1f0] sm:$0xff]
    %v722 = vld [vmem:[#allocation10 + $0x1f8] sm:$0xff]
    %v723 = vld [vmem:[#allocation11] sm:$0xff]
    %v725 = vperm.slane %v723, 0
    %v726 = vperm.slane %v723, 1
    %v727 = vperm.slane %v723, 2
    %v728 = vperm.slane %v723, 3
    %v729 = vperm.slane %v723, 4
    %v730 = vperm.slane %v723, 5
    %v731 = vperm.slane %v723, 6
    %v732 = vperm.slane %v723, 7
    %v743 = vunpack.c.l.b16 %v657
    %v744 = vunpack.c.l.b16 %v658
    %v745 = vpack.c.b16 %v744, %v743
    %v811 = vunpack.c.l.b16 %v659
    %v812 = vunpack.c.h.b16 %v659
    %v813 = vunpack.c.l.b16 %v660
    %v814 = vunpack.c.h.b16 %v660
    %v815 = vunpack.c.l.b16 %v661
    %v816 = vunpack.c.h.b16 %v661
    %v817 = vunpack.c.l.b16 %v662
    %v818 = vunpack.c.h.b16 %v662
    %v819 = vunpack.c.l.b16 %v663
    %v820 = vunpack.c.h.b16 %v663
    %v821 = vunpack.c.l.b16 %v664
    %v822 = vunpack.c.h.b16 %v664
    %v823 = vunpack.c.l.b16 %v665
    %v824 = vunpack.c.h.b16 %v665
    %v825 = vunpack.c.l.b16 %v666
    %v826 = vunpack.c.h.b16 %v666
    %v827 = vunpack.c.l.b16 %v667
    %v828 = vunpack.c.h.b16 %v667
    %v829 = vunpack.c.l.b16 %v668
    %v830 = vunpack.c.h.b16 %v668
    %v831 = vunpack.c.l.b16 %v669
    %v832 = vunpack.c.h.b16 %v669
    %v833 = vunpack.c.l.b16 %v670
    %v834 = vunpack.c.h.b16 %v670
    %v835 = vunpack.c.l.b16 %v671
    %v836 = vunpack.c.h.b16 %v671
    %v837 = vunpack.c.l.b16 %v672
    %v838 = vunpack.c.h.b16 %v672
    %v839 = vunpack.c.l.b16 %v673
    %v840 = vunpack.c.h.b16 %v673
    %v841 = vunpack.c.l.b16 %v674
    %v842 = vunpack.c.h.b16 %v674
    %v843 = vunpack.c.l.b16 %v675
    %v844 = vunpack.c.h.b16 %v675
    %v845 = vunpack.c.l.b16 %v676
    %v846 = vunpack.c.h.b16 %v676
    %v847 = vunpack.c.l.b16 %v677
    %v848 = vunpack.c.h.b16 %v677
    %v849 = vunpack.c.l.b16 %v678
    %v850 = vunpack.c.h.b16 %v678
    %v851 = vunpack.c.l.b16 %v679
    %v852 = vunpack.c.h.b16 %v679
    %v853 = vunpack.c.l.b16 %v680
    %v854 = vunpack.c.h.b16 %v680
    %v855 = vunpack.c.l.b16 %v681
    %v856 = vunpack.c.h.b16 %v681
    %v857 = vunpack.c.l.b16 %v682
    %v858 = vunpack.c.h.b16 %v682
    %v859 = vunpack.c.l.b16 %v683
    %v860 = vunpack.c.h.b16 %v683
    %v861 = vunpack.c.l.b16 %v684
    %v862 = vunpack.c.h.b16 %v684
    %v863 = vunpack.c.l.b16 %v685
    %v864 = vunpack.c.h.b16 %v685
    %v865 = vunpack.c.l.b16 %v686
    %v866 = vunpack.c.h.b16 %v686
    %v867 = vunpack.c.l.b16 %v687
    %v868 = vunpack.c.h.b16 %v687
    %v869 = vunpack.c.l.b16 %v688
    %v870 = vunpack.c.h.b16 %v688
    %v871 = vunpack.c.l.b16 %v689
    %v872 = vunpack.c.h.b16 %v689
    %v873 = vunpack.c.l.b16 %v690
    %v874 = vunpack.c.h.b16 %v690
    %v875 = vunpack.c.l.b16 %v691
    %v876 = vunpack.c.h.b16 %v691
    %v877 = vunpack.c.l.b16 %v692
    %v878 = vunpack.c.h.b16 %v692
    %v879 = vunpack.c.l.b16 %v693
    %v880 = vunpack.c.h.b16 %v693
    %v881 = vunpack.c.l.b16 %v694
    %v882 = vunpack.c.h.b16 %v694
    %v883 = vunpack.c.l.b16 %v695
    %v884 = vunpack.c.h.b16 %v695
    %v885 = vunpack.c.l.b16 %v696
    %v886 = vunpack.c.h.b16 %v696
    %v887 = vunpack.c.l.b16 %v697
    %v888 = vunpack.c.h.b16 %v697
    %v889 = vunpack.c.l.b16 %v698
    %v890 = vunpack.c.h.b16 %v698
    %v891 = vunpack.c.l.b16 %v699
    %v892 = vunpack.c.h.b16 %v699
    %v893 = vunpack.c.l.b16 %v700
    %v894 = vunpack.c.h.b16 %v700
    %v895 = vunpack.c.l.b16 %v701
    %v896 = vunpack.c.h.b16 %v701
    %v897 = vunpack.c.l.b16 %v702
    %v898 = vunpack.c.h.b16 %v702
    %v899 = vunpack.c.l.b16 %v703
    %v900 = vunpack.c.h.b16 %v703
    %v901 = vunpack.c.l.b16 %v704
    %v902 = vunpack.c.h.b16 %v704
    %v903 = vunpack.c.l.b16 %v705
    %v904 = vunpack.c.h.b16 %v705
    %v905 = vunpack.c.l.b16 %v706
    %v906 = vunpack.c.h.b16 %v706
    %v907 = vunpack.c.l.b16 %v707
    %v908 = vunpack.c.h.b16 %v707
    %v909 = vunpack.c.l.b16 %v708
    %v910 = vunpack.c.h.b16 %v708
    %v911 = vunpack.c.l.b16 %v709
    %v912 = vunpack.c.h.b16 %v709
    %v913 = vunpack.c.l.b16 %v710
    %v914 = vunpack.c.h.b16 %v710
    %v915 = vunpack.c.l.b16 %v711
    %v916 = vunpack.c.h.b16 %v711
    %v917 = vunpack.c.l.b16 %v712
    %v918 = vunpack.c.h.b16 %v712
    %v919 = vunpack.c.l.b16 %v713
    %v920 = vunpack.c.h.b16 %v713
    %v921 = vunpack.c.l.b16 %v714
    %v922 = vunpack.c.h.b16 %v714
    %v923 = vunpack.c.l.b16 %v715
    %v924 = vunpack.c.h.b16 %v715
    %v925 = vunpack.c.l.b16 %v716
    %v926 = vunpack.c.h.b16 %v716
    %v927 = vunpack.c.l.b16 %v717
    %v928 = vunpack.c.h.b16 %v717
    %v929 = vunpack.c.l.b16 %v718
    %v930 = vunpack.c.h.b16 %v718
    %v931 = vunpack.c.l.b16 %v719
    %v932 = vunpack.c.h.b16 %v719
    %v933 = vunpack.c.l.b16 %v720
    %v934 = vunpack.c.h.b16 %v720
    %v935 = vunpack.c.l.b16 %v721
    %v936 = vunpack.c.h.b16 %v721
    %v937 = vunpack.c.l.b16 %v722
    %v938 = vunpack.c.h.b16 %v722
    %v939 = vpack.c.b16 %v819, %v811
    %v940 = vpack.c.b16 %v820, %v812
    %v941 = vpack.c.b16 %v821, %v813
    %v942 = vpack.c.b16 %v822, %v814
    %v943 = vpack.c.b16 %v823, %v815
    %v944 = vpack.c.b16 %v824, %v816
    %v945 = vpack.c.b16 %v825, %v817
    %v946 = vpack.c.b16 %v826, %v818
    %v947 = vpack.c.b16 %v835, %v827
    %v948 = vpack.c.b16 %v836, %v828
    %v949 = vpack.c.b16 %v837, %v829
    %v950 = vpack.c.b16 %v838, %v830
    %v951 = vpack.c.b16 %v839, %v831
    %v952 = vpack.c.b16 %v840, %v832
    %v953 = vpack.c.b16 %v841, %v833
    %v954 = vpack.c.b16 %v842, %v834
    %v955 = vpack.c.b16 %v851, %v843
    %v956 = vpack.c.b16 %v852, %v844
    %v957 = vpack.c.b16 %v853, %v845
    %v958 = vpack.c.b16 %v854, %v846
    %v959 = vpack.c.b16 %v855, %v847
    %v960 = vpack.c.b16 %v856, %v848
    %v961 = vpack.c.b16 %v857, %v849
    %v962 = vpack.c.b16 %v858, %v850
    %v963 = vpack.c.b16 %v867, %v859
    %v964 = vpack.c.b16 %v868, %v860
    %v965 = vpack.c.b16 %v869, %v861
    %v966 = vpack.c.b16 %v870, %v862
    %v967 = vpack.c.b16 %v871, %v863
    %v968 = vpack.c.b16 %v872, %v864
    %v969 = vpack.c.b16 %v873, %v865
    %v970 = vpack.c.b16 %v874, %v866
    %v971 = vpack.c.b16 %v883, %v875
    %v972 = vpack.c.b16 %v884, %v876
    %v973 = vpack.c.b16 %v885, %v877
    %v974 = vpack.c.b16 %v886, %v878
    %v975 = vpack.c.b16 %v887, %v879
    %v976 = vpack.c.b16 %v888, %v880
    %v977 = vpack.c.b16 %v889, %v881
    %v978 = vpack.c.b16 %v890, %v882
    %v979 = vpack.c.b16 %v899, %v891
    %v980 = vpack.c.b16 %v900, %v892
    %v981 = vpack.c.b16 %v901, %v893
    %v982 = vpack.c.b16 %v902, %v894
    %v983 = vpack.c.b16 %v903, %v895
    %v984 = vpack.c.b16 %v904, %v896
    %v985 = vpack.c.b16 %v905, %v897
    %v986 = vpack.c.b16 %v906, %v898
    %v987 = vpack.c.b16 %v915, %v907
    %v988 = vpack.c.b16 %v916, %v908
    %v989 = vpack.c.b16 %v917, %v909
    %v990 = vpack.c.b16 %v918, %v910
    %v991 = vpack.c.b16 %v919, %v911
    %v992 = vpack.c.b16 %v920, %v912
    %v993 = vpack.c.b16 %v921, %v913
    %v994 = vpack.c.b16 %v922, %v914
    %v995 = vpack.c.b16 %v931, %v923
    %v996 = vpack.c.b16 %v932, %v924
    %v997 = vpack.c.b16 %v933, %v925
    %v998 = vpack.c.b16 %v934, %v926
    %v999 = vpack.c.b16 %v935, %v927
    %v1000 = vpack.c.b16 %v936, %v928
    %v1001 = vpack.c.b16 %v937, %v929
    %v1002 = vpack.c.b16 %v938, %v930
    %1067 = vmatpush.bf16.msra.mxu0 %v995
    %1068 = vmatpush.bf16.msra.mxu0 %v987
    %1069 = vmatpush.bf16.msra.mxu0 %v979
    %1070 = vmatpush.bf16.msra.mxu0 %v971
    %1071 = vmatpush.bf16.msra.mxu0 %v963
    %1072 = vmatpush.bf16.msra.mxu0 %v955
    %1073 = vmatpush.bf16.msra.mxu0 %v947
    %1074 = vmatpush.bf16.msra.mxu0 %v939
    %1075 = vmatmul.bf16.gmra.mxu0 %v745
    %v1076 = vpop.f32.mrf.mxu0
    %v1077 = vadd.f32 %v725, %v1076
    %v1078 = vpop.f32.mrf.mxu0
    %v1079 = vadd.f32 %v725, %v1078
    %1080 = vdwg.mxu0
    %1081 = vmatpush.bf16.msra.mxu0 %v996
    %1082 = vmatpush.bf16.msra.mxu0 %v988
    %1083 = vmatpush.bf16.msra.mxu0 %v980
    %1084 = vmatpush.bf16.msra.mxu0 %v972
    %1085 = vmatpush.bf16.msra.mxu0 %v964
    %1086 = vmatpush.bf16.msra.mxu0 %v956
    %1087 = vmatpush.bf16.msra.mxu0 %v948
    %1088 = vmatpush.bf16.msra.mxu0 %v940
    %1089 = vmatmul.bf16.gmra.mxu0 %v745
    %v1090 = vpop.f32.mrf.mxu0
    %v1091 = vadd.f32 %v726, %v1090
    %v1092 = vpop.f32.mrf.mxu0
    %v1093 = vadd.f32 %v726, %v1092
    %1094 = vdwg.mxu0
    %1095 = vmatpush.bf16.msra.mxu0 %v997
    %1096 = vmatpush.bf16.msra.mxu0 %v989
    %1097 = vmatpush.bf16.msra.mxu0 %v981
    %1098 = vmatpush.bf16.msra.mxu0 %v973
    %1099 = vmatpush.bf16.msra.mxu0 %v965
    %1100 = vmatpush.bf16.msra.mxu0 %v957
    %1101 = vmatpush.bf16.msra.mxu0 %v949
    %1102 = vmatpush.bf16.msra.mxu0 %v941
    %1103 = vmatmul.bf16.gmra.mxu0 %v745
    %v1104 = vpop.f32.mrf.mxu0
    %v1105 = vadd.f32 %v727, %v1104
    %v1106 = vpop.f32.mrf.mxu0
    %v1107 = vadd.f32 %v727, %v1106
    %1108 = vdwg.mxu0
    %1109 = vmatpush.bf16.msra.mxu0 %v998
    %1110 = vmatpush.bf16.msra.mxu0 %v990
    %1111 = vmatpush.bf16.msra.mxu0 %v982
    %1112 = vmatpush.bf16.msra.mxu0 %v974
    %1113 = vmatpush.bf16.msra.mxu0 %v966
    %1114 = vmatpush.bf16.msra.mxu0 %v958
    %1115 = vmatpush.bf16.msra.mxu0 %v950
    %1116 = vmatpush.bf16.msra.mxu0 %v942
    %1117 = vmatmul.bf16.gmra.mxu0 %v745
    %v1118 = vpop.f32.mrf.mxu0
    %v1119 = vadd.f32 %v728, %v1118
    %v1120 = vpop.f32.mrf.mxu0
    %v1121 = vadd.f32 %v728, %v1120
    %1122 = vdwg.mxu0
    %1123 = vmatpush.bf16.msra.mxu0 %v999
    %1124 = vmatpush.bf16.msra.mxu0 %v991
    %1125 = vmatpush.bf16.msra.mxu0 %v983
    %1126 = vmatpush.bf16.msra.mxu0 %v975
    %1127 = vmatpush.bf16.msra.mxu0 %v967
    %1128 = vmatpush.bf16.msra.mxu0 %v959
    %1129 = vmatpush.bf16.msra.mxu0 %v951
    %1130 = vmatpush.bf16.msra.mxu0 %v943
    %1131 = vmatmul.bf16.gmra.mxu0 %v745
    %v1132 = vpop.f32.mrf.mxu0
    %v1133 = vadd.f32 %v729, %v1132
    %v1134 = vpop.f32.mrf.mxu0
    %v1135 = vadd.f32 %v729, %v1134
    %1136 = vdwg.mxu0
    %1137 = vmatpush.bf16.msra.mxu0 %v1000
    %1138 = vmatpush.bf16.msra.mxu0 %v992
    %1139 = vmatpush.bf16.msra.mxu0 %v984
    %1140 = vmatpush.bf16.msra.mxu0 %v976
    %1141 = vmatpush.bf16.msra.mxu0 %v968
    %1142 = vmatpush.bf16.msra.mxu0 %v960
    %1143 = vmatpush.bf16.msra.mxu0 %v952
    %1144 = vmatpush.bf16.msra.mxu0 %v944
    %1145 = vmatmul.bf16.gmra.mxu0 %v745
    %v1146 = vpop.f32.mrf.mxu0
    %v1147 = vadd.f32 %v730, %v1146
    %v1148 = vpop.f32.mrf.mxu0
    %v1149 = vadd.f32 %v730, %v1148
    %1150 = vdwg.mxu0
    %1151 = vmatpush.bf16.msra.mxu0 %v1001
    %1152 = vmatpush.bf16.msra.mxu0 %v993
    %1153 = vmatpush.bf16.msra.mxu0 %v985
    %1154 = vmatpush.bf16.msra.mxu0 %v977
    %1155 = vmatpush.bf16.msra.mxu0 %v969
    %1156 = vmatpush.bf16.msra.mxu0 %v961
    %1157 = vmatpush.bf16.msra.mxu0 %v953
    %1158 = vmatpush.bf16.msra.mxu0 %v945
    %1159 = vmatmul.bf16.gmra.mxu0 %v745
    %v1160 = vpop.f32.mrf.mxu0
    %v1161 = vadd.f32 %v731, %v1160
    %v1162 = vpop.f32.mrf.mxu0
    %v1163 = vadd.f32 %v731, %v1162
    %1164 = vdwg.mxu0
    %1165 = vmatpush.bf16.msra.mxu0 %v1002
    %1166 = vmatpush.bf16.msra.mxu0 %v994
    %1167 = vmatpush.bf16.msra.mxu0 %v986
    %1168 = vmatpush.bf16.msra.mxu0 %v978
    %1169 = vmatpush.bf16.msra.mxu0 %v970
    %1170 = vmatpush.bf16.msra.mxu0 %v962
    %1171 = vmatpush.bf16.msra.mxu0 %v954
    %1172 = vmatpush.bf16.msra.mxu0 %v946
    %1173 = vmatmul.bf16.gmra.mxu0 %v745
    %v1174 = vpop.f32.mrf.mxu0
    %v1175 = vadd.f32 %v732, %v1174
    %v1176 = vpop.f32.mrf.mxu0
    %v1177 = vadd.f32 %v732, %v1176
    %1178 = vdwg.mxu0
    %v1179 = vmul.f32 %v555, %v1077
    %v1180 = vmul.f32 %v569, %v1091
    %v1181 = vmul.f32 %v583, %v1105
    %v1182 = vmul.f32 %v597, %v1119
    %v1183 = vmul.f32 %v611, %v1133
    %v1184 = vmul.f32 %v625, %v1147
    %v1185 = vmul.f32 %v639, %v1161
    %v1186 = vmul.f32 %v653, %v1175
    %v1187 = vmul.f32 %v557, %v1079
    %v1188 = vmul.f32 %v571, %v1093
    %v1189 = vmul.f32 %v585, %v1107
    %v1190 = vmul.f32 %v599, %v1121
    %v1191 = vmul.f32 %v613, %v1135
    %v1192 = vmul.f32 %v627, %v1149
    %v1193 = vmul.f32 %v641, %v1163
    %v1194 = vmul.f32 %v655, %v1177
    %v1195 = vadd.f32 %v1179, %v1180
    %v1196 = vadd.f32 %v1187, %v1188
    %v1197 = vadd.f32 %v1195, %v1181
    %v1198 = vadd.f32 %v1196, %v1189
    %v1199 = vadd.f32 %v1197, %v1182
    %v1200 = vadd.f32 %v1198, %v1190
    %v1201 = vadd.f32 %v1199, %v1183
    %v1202 = vadd.f32 %v1200, %v1191
    %v1203 = vadd.f32 %v1201, %v1184
    %v1204 = vadd.f32 %v1202, %v1192
    %v1205 = vadd.f32 %v1203, %v1185
    %v1206 = vadd.f32 %v1204, %v1193
    %v1207 = vadd.f32 %v1205, %v1186
    %v1208 = vadd.f32 %v1206, %v1194
    %v1209 = vmul.f32 %v1207, %v1207
    %v1210 = vmul.f32 %v1208, %v1208
    %1211 = vadd.xlane.f32.xlu0 %v1209
    %v1212 = vpop.xlane.xlu0 %1211
    %1213 = vadd.xlane.f32.xlu0 %v1210
    %v1214 = vpop.xlane.xlu0 %1213
    %v1215 = vmax.f32 %v1212, 1e-24
    %v1216 = vmax.f32 %v1214, 1e-24
    %v1217 = vrsqrt.pop %v1215
    %v1218 = vmul.f32 %v1217, %v1215
    %v1219 = vmul.f32 %v1218, %v1217
    %v1220 = vmul.f32 0.5, %v1219
    %v1221 = vsub.f32 1.5, %v1220
    %v1222 = vmul.f32 %v1217, %v1221
    %vm1223 = vweird.f32 %v1215
    %vm1224 = vweird.f32 %v1217
    %vm1225 = vmor %vm1223, %vm1224
    %v1226 = vsel %vm1225, %v1217, %v1222
    %v1227 = vrsqrt.pop %v1216
    %v1228 = vmul.f32 %v1227, %v1216
    %v1229 = vmul.f32 %v1228, %v1227
    %v1230 = vmul.f32 0.5, %v1229
    %v1231 = vsub.f32 1.5, %v1230
    %v1232 = vmul.f32 %v1227, %v1231
    %vm1233 = vweird.f32 %v1216
    %vm1234 = vweird.f32 %v1227
    %vm1235 = vmor %vm1233, %vm1234
    %v1236 = vsel %vm1235, %v1227, %v1232
    %v1237 = vmul.f32 %v1207, %v1226
    %v1238 = vmul.f32 %v1208, %v1236
    %v1239 = vmax.f32 %v1237, 0.0
    %v1240 = vmax.f32 %v1238, 0.0
    %v1241 = vpack.c.bf16 %v1240, %v1239
    %v1242 = vpack.c.bf16 %v1238, %v1237
    %v1243 = vld [vmem:[#allocation13] sm:$0xff]
    %v1244 = vld [vmem:[#allocation13 + $0x8] sm:$0xff]
    %v1245 = vld [vmem:[#allocation13 + $0x10] sm:$0xff]
    %v1246 = vld [vmem:[#allocation13 + $0x18] sm:$0xff]
    %v1247 = vld [vmem:[#allocation13 + $0x20] sm:$0xff]
    %v1248 = vld [vmem:[#allocation13 + $0x28] sm:$0xff]
    %v1249 = vld [vmem:[#allocation13 + $0x30] sm:$0xff]
    %v1250 = vld [vmem:[#allocation13 + $0x38] sm:$0xff]
    %v1251 = vld [vmem:[#allocation13 + $0x40] sm:$0xff]
    %v1252 = vld [vmem:[#allocation13 + $0x48] sm:$0xff]
    %v1253 = vld [vmem:[#allocation13 + $0x50] sm:$0xff]
    %v1254 = vld [vmem:[#allocation13 + $0x58] sm:$0xff]
    %v1255 = vld [vmem:[#allocation13 + $0x60] sm:$0xff]
    %v1256 = vld [vmem:[#allocation13 + $0x68] sm:$0xff]
    %v1257 = vld [vmem:[#allocation13 + $0x70] sm:$0xff]
    %v1258 = vld [vmem:[#allocation13 + $0x78] sm:$0xff]
    %v1259 = vld [vmem:[%s7] sm:$0x3]
    %v1261 = vperm.slane %v1259, 0
    %v1262 = vperm.slane %v1259, 1
    %v1281 = vunpack.c.l.b16 %v1243
    %v1282 = vunpack.c.h.b16 %v1243
    %v1283 = vunpack.c.l.b16 %v1244
    %v1284 = vunpack.c.h.b16 %v1244
    %v1285 = vunpack.c.l.b16 %v1245
    %v1286 = vunpack.c.h.b16 %v1245
    %v1287 = vunpack.c.l.b16 %v1246
    %v1288 = vunpack.c.h.b16 %v1246
    %v1289 = vunpack.c.l.b16 %v1247
    %v1290 = vunpack.c.h.b16 %v1247
    %v1291 = vunpack.c.l.b16 %v1248
    %v1292 = vunpack.c.h.b16 %v1248
    %v1293 = vunpack.c.l.b16 %v1249
    %v1294 = vunpack.c.h.b16 %v1249
    %v1295 = vunpack.c.l.b16 %v1250
    %v1296 = vunpack.c.h.b16 %v1250
    %v1297 = vunpack.c.l.b16 %v1251
    %v1298 = vunpack.c.h.b16 %v1251
    %v1299 = vunpack.c.l.b16 %v1252
    %v1300 = vunpack.c.h.b16 %v1252
    %v1301 = vunpack.c.l.b16 %v1253
    %v1302 = vunpack.c.h.b16 %v1253
    %v1303 = vunpack.c.l.b16 %v1254
    %v1304 = vunpack.c.h.b16 %v1254
    %v1305 = vunpack.c.l.b16 %v1255
    %v1306 = vunpack.c.h.b16 %v1255
    %v1307 = vunpack.c.l.b16 %v1256
    %v1308 = vunpack.c.h.b16 %v1256
    %v1309 = vunpack.c.l.b16 %v1257
    %v1310 = vunpack.c.h.b16 %v1257
    %v1311 = vunpack.c.l.b16 %v1258
    %v1312 = vunpack.c.h.b16 %v1258
    %v1313 = vpack.c.b16 %v1283, %v1281
    %v1314 = vpack.c.b16 %v1284, %v1282
    %v1315 = vpack.c.b16 %v1287, %v1285
    %v1316 = vpack.c.b16 %v1288, %v1286
    %v1317 = vpack.c.b16 %v1291, %v1289
    %v1318 = vpack.c.b16 %v1292, %v1290
    %v1319 = vpack.c.b16 %v1295, %v1293
    %v1320 = vpack.c.b16 %v1296, %v1294
    %v1321 = vpack.c.b16 %v1299, %v1297
    %v1322 = vpack.c.b16 %v1300, %v1298
    %v1323 = vpack.c.b16 %v1303, %v1301
    %v1324 = vpack.c.b16 %v1304, %v1302
    %v1325 = vpack.c.b16 %v1307, %v1305
    %v1326 = vpack.c.b16 %v1308, %v1306
    %v1327 = vpack.c.b16 %v1311, %v1309
    %v1328 = vpack.c.b16 %v1312, %v1310
    %1345 = vmatpush.bf16.msra.mxu0 %v1327
    %1346 = vmatpush.bf16.msra.mxu0 %v1325
    %1347 = vmatpush.bf16.msra.mxu0 %v1323
    %1348 = vmatpush.bf16.msra.mxu0 %v1321
    %1349 = vmatpush.bf16.msra.mxu0 %v1319
    %1350 = vmatpush.bf16.msra.mxu0 %v1317
    %1351 = vmatpush.bf16.msra.mxu0 %v1315
    %1352 = vmatpush.bf16.msra.mxu0 %v1313
    %1353 = vmatmul.bf16.gmra.mxu0 %v1241
    %v1354 = vpop.f32.mrf.mxu0
    %v1355 = vadd.f32 %v1261, %v1354
    %v1356 = vpop.f32.mrf.mxu0
    %v1357 = vadd.f32 %v1261, %v1356
    %1358 = vmatmul.bf16.gmra.mxu0 %v1242
    %v1359 = vpop.f32.mrf.mxu0
    %v1360 = vadd.f32 %v1261, %v1359
    %v1361 = vpop.f32.mrf.mxu0
    %v1362 = vadd.f32 %v1261, %v1361
    %1363 = vdwg.mxu0
    %1364 = vmatpush.bf16.msra.mxu0 %v1328
    %1365 = vmatpush.bf16.msra.mxu0 %v1326
    %1366 = vmatpush.bf16.msra.mxu0 %v1324
    %1367 = vmatpush.bf16.msra.mxu0 %v1322
    %1368 = vmatpush.bf16.msra.mxu0 %v1320
    %1369 = vmatpush.bf16.msra.mxu0 %v1318
    %1370 = vmatpush.bf16.msra.mxu0 %v1316
    %1371 = vmatpush.bf16.msra.mxu0 %v1314
    %1372 = vmatmul.bf16.gmra.mxu0 %v1241
    %v1373 = vpop.f32.mrf.mxu0
    %v1374 = vadd.f32 %v1262, %v1373
    %v1375 = vpop.f32.mrf.mxu0
    %v1376 = vadd.f32 %v1262, %v1375
    %1377 = vmatmul.bf16.gmra.mxu0 %v1242
    %v1378 = vpop.f32.mrf.mxu0
    %v1379 = vadd.f32 %v1262, %v1378
    %v1380 = vpop.f32.mrf.mxu0
    %v1381 = vadd.f32 %v1262, %v1380
    %1382 = vdwg.mxu0
    %v1383 = vlaneseq
    %v1384 = vand.u32 %v1383, 127
    %v1385 = vadd.s32 %v1384, 128
    %vm1386 = vcmp.lt.s32.totalorder %v1384, 192
    %vm1387 = vcmp.lt.s32.totalorder %v1385, 192
    %v1388 = vsel %vm1386, %v1360, %v1355
    %v1389 = vsel %vm1387, %v1379, %v1374
    %v1390 = vsel %vm1386, %v1362, %v1357
    %v1391 = vsel %vm1387, %v1381, %v1376
    %1392 = vst [vmem:[#allocation14] sm:$0xff] %v1388
    %1393 = vst [vmem:[#allocation14 + $0x8] sm:$0xff] %v1389
    %1394 = vst [vmem:[#allocation14 + $0x10] sm:$0xff] %v1390
    %1395 = vst [vmem:[#allocation14 + $0x18] sm:$0xff] %v1391
    // Predicated region
    $region62: #{tpu_custom_call.1} parent=1 // pred_check
      _
    $region63: #{tpu_custom_call.1} parent=1 // pred_check_branch
      %1397 = sbr.rel (0) target = $region65
    $region64: #{tpu_custom_call.1} parent=1 // pred_region
      %1399 = vsyncadd [#allocation4], 0
      %s1400 = sshll.u32 [#allocation14], 4
      %s1401 = int_to_ptr.vmem [resolvable:$true] %s1400
      %s1402 = sshll.u32 %s8, 4
      %s1403 = int_to_ptr.hbm [resolvable:$true] %s1402
      %1408 = dma.vmem_to_hbm [thread:$0]  %s1401, 512, %s1403, [#allocation4], 256, 256, 16
    $region65: #{tpu_custom_call.1} parent=1 // pred_fallthru
      _
    // Predicated region
    $region66: #{tpu_custom_call.1} parent=1 // pred_check
      _
    $region67: #{tpu_custom_call.1} parent=1 // pred_check_branch
      %1410 = sbr.rel (0) target = $region69
    $region68: #{tpu_custom_call.1} parent=1 // pred_region
      %1412 = dma.done [#allocation4], 512
    $region69: #{tpu_custom_call.1} parent=1 // pred_fallthru
      _
    %1413 = vsyncpa [#allocation3], 1
    %1414 = vsyncpa [#allocation6], 1
    %1415 = vsyncpa [#allocation9], 1
    %1416 = vsyncpa [#allocation12], 1
    %1417 = vsyncpa [#allocation4], 1

</llo_original>
